<compile_context>
chip_gen: v5e
topology: v5e:2x2
jax: 0.10.0
libtpu: 0.0.40
codegen_flags: <defaults>
</compile_context>

<pallas_src>
import jax
import jax.numpy as jnp
from jax.experimental import pallas as pl
from jax.experimental.pallas import tpu as pltpu

NEG_SLOPE = 0.01   # torch.nn.LeakyReLU default negative_slope
ROW_TILE = 512     # rows per grid step (lane aligned; conservative for v7x VMEM)


def coma_critic_kernel(x_ref, u_ref, w1_ref, b1_ref, w2_ref, b2_ref,
                       w3_ref, b3_ref, q_ref):
    """One grid step = one row tile; all agents unrolled inside.

    Transposed layout (rows on the lane axis):
      x_ref : (Dall_pad, TR)     shared packed features for this row tile
      u_ref : (N, A, TR)         per-agent one-hot actions
      w1_ref: (N, H, Dall_pad)   fc1 weights, [out, in] over the shared layout
      b1_ref: (N, H, 1)   w2_ref: (N, H, H)   b2_ref: (N, H, 1)
      w3_ref: (N, A, H)   b3_ref: (N, A, 1)
      q_ref : (N, 1, TR)         chosen-action Q per agent (lane-dense store)
    """
    xt = x_ref[...]
    n_agents = w1_ref.shape[0]
    for a in range(n_agents):                      # small & static -> unrolled
        h = jnp.dot(w1_ref[a], xt, preferred_element_type=jnp.float32) + b1_ref[a]
        h = jnp.maximum(h, NEG_SLOPE * h)          # LeakyReLU
        h = jnp.dot(w2_ref[a], h, preferred_element_type=jnp.float32) + b2_ref[a]
        h = jnp.maximum(h, NEG_SLOPE * h)          # LeakyReLU
        q_all = jnp.dot(w3_ref[a], h, preferred_element_type=jnp.float32) + b3_ref[a]  # (A, TR)

        u = u_ref[a]                               # (A, TR), one-hot along A
        q = jnp.sum(q_all * u, axis=0, keepdims=True)            # (1, TR)
        # torch gathers at argmax(u); for an all-zero (padded) row that is
        # index 0, so add q_all[0] weighted by (1 - sum(u)).
        q = q + (1.0 - jnp.sum(u, axis=0, keepdims=True)) * q_all[0:1, :]
        q_ref[a] = q


def _round_up(x, m):
    return ((x + m - 1) // m) * m


def _pack_fc1(w1, n_agents, obs_dim, act_dim, dall_pad):
    """Scatter each agent's fc1 weight (torch chunk order [obs_i, (obs_j,u_j) j!=i])
    into the shared [obs_0,u_0,...,obs_{N-1},u_{N-1}] layout (own action -> 0).
    Returns the [out, in] transposed form (N, hidden, dall_pad)."""
    sa = obs_dim + act_dim
    hid = w1.shape[-1]
    packed = jnp.zeros((n_agents, dall_pad, hid), w1.dtype)
    for i in range(n_agents):
        packed = packed.at[i, i * sa:i * sa + obs_dim, :].set(w1[i, :obs_dim, :])
        off = obs_dim
        for j in range(n_agents):
            if j == i:
                continue
            packed = packed.at[i, j * sa:(j + 1) * sa, :].set(w1[i, off:off + sa, :])
            off += sa
    return jnp.transpose(packed, (0, 2, 1))


def coma_critic_forward(obs_list, u_list, params):
    """Returns a list (len n_agents) of per-agent chosen-action Q values [B, T, 1]."""
    n_agents = len(obs_list)
    b, t, obs_dim = obs_list[0].shape
    act_dim = u_list[0].shape[-1]
    rows = b * t

    w1, b1, w2, b2, w3, b3 = params
    hid = w1.shape[-1]

    sa = obs_dim + act_dim
    dall = n_agents * sa
    dall_pad = _round_up(dall, 8)

    # Shared packed feature slab [obs_0|u_0|...|obs_{N-1}|u_{N-1}], transposed so
    # rows land on the lane axis (lane-dense kernel input and output).
    feats = []
    for o, u in zip(obs_list, u_list):
        feats.append(o.reshape(rows, obs_dim))
        feats.append(u.reshape(rows, act_dim))
    x = jnp.concatenate(feats, axis=1)                                 # (rows, dall)
    if dall_pad > dall:
        x = jnp.pad(x, ((0, 0), (0, dall_pad - dall)))
    x_t = x.T                                                          # (dall_pad, rows)
    u_t = jnp.stack([u.reshape(rows, act_dim).T for u in u_list], 0)   # (N, A, rows)

    # Row tiling: pipelined, and "parallel" so multi-TensorCore parts can shard it.
    if rows > ROW_TILE:
        tr = ROW_TILE
        rows_pad = _round_up(rows, tr)
        if rows_pad > rows:
            x_t = jnp.pad(x_t, ((0, 0), (0, rows_pad - rows)))
            u_t = jnp.pad(u_t, ((0, 0), (0, 0), (0, rows_pad - rows)))
    else:
        tr = rows
        rows_pad = rows
    n_tiles = rows_pad // tr

    # Weights in [out, in] layout; fc1 scattered onto the shared input layout.
    w1_t = _pack_fc1(w1, n_agents, obs_dim, act_dim, dall_pad)         # (N, H, Dall_pad)
    w2_t = jnp.transpose(w2, (0, 2, 1))                                # (N, H, H)
    w3_t = jnp.transpose(w3, (0, 2, 1))                                # (N, A, H)
    b1_t = jnp.transpose(b1, (0, 2, 1))                                # (N, H, 1)
    b2_t = jnp.transpose(b2, (0, 2, 1))                                # (N, H, 1)
    b3_t = jnp.transpose(b3, (0, 2, 1))                                # (N, A, 1)

    const = lambda r: (0, 0, 0)   # weights/biases: DMA once, stay resident in VMEM

    q = pl.pallas_call(
        coma_critic_kernel,
        out_shape=jax.ShapeDtypeStruct((n_agents, 1, rows_pad), jnp.float32),
        grid_spec=pltpu.PrefetchScalarGridSpec(
            num_scalar_prefetch=0,
            grid=(n_tiles,),
            in_specs=[
                pl.BlockSpec((dall_pad, tr), lambda r: (0, r)),              # x^T
                pl.BlockSpec((n_agents, act_dim, tr), lambda r: (0, 0, r)),  # u^T
                pl.BlockSpec((n_agents, hid, dall_pad), const),              # W1
                pl.BlockSpec((n_agents, hid, 1), const),                     # b1
                pl.BlockSpec((n_agents, hid, hid), const),                   # W2
                pl.BlockSpec((n_agents, hid, 1), const),                     # b2
                pl.BlockSpec((n_agents, act_dim, hid), const),               # W3
                pl.BlockSpec((n_agents, act_dim, 1), const),                 # b3
            ],
            out_specs=pl.BlockSpec((n_agents, 1, tr), lambda r: (0, 0, r)),
        ),
        compiler_params=pltpu.CompilerParams(
            dimension_semantics=("parallel",)),
    )(x_t, u_t, w1_t, b1_t, w2_t, b2_t, w3_t, b3_t)

    q = q[:, 0, :rows]                                                  # (N, rows)
    return [q[i].reshape(b, t, 1) for i in range(n_agents)]


# ----------------------------------------------------------------------------
# Parameter init + pure-JAX reference (mirrors the PyTorch module exactly).
# ----------------------------------------------------------------------------
def init_params(key, n_agents, din, hidden, n_actions):
    """Deterministic, torch-Linear-like uniform init. Weights are [in, out]."""
    ks = jax.random.split(key, 6)

    def lin(kw, fan_in, fan_out):
        bound = 1.0 / jnp.sqrt(fan_in)
        return jax.random.uniform(kw, (n_agents, fan_in, fan_out), jnp.float32,
                                  -bound, bound)

    def bias(kb, fan_in, fan_out):
        bound = 1.0 / jnp.sqrt(fan_in)
        return jax.random.uniform(kb, (n_agents, 1, fan_out), jnp.float32,
                                  -bound, bound)

    w1 = lin(ks[0], din, hidden)
    b1 = bias(ks[1], din, hidden)
    w2 = lin(ks[2], hidden, hidden)
    b2 = bias(ks[3], hidden, hidden)
    w3 = lin(ks[4], hidden, n_actions)
    b3 = bias(ks[5], hidden, n_actions)
    return (w1, b1, w2, b2, w3, b3)


def _build_critic_inputs(obs_list, u_list):
    """Replicates the per-agent input construction of ComaCritic.forward."""
    n_agents = len(obs_list)
    inputs = [jnp.concatenate([o, u], axis=2) for o, u in zip(obs_list, u_list)]
    critic_ins = []
    for i in range(n_agents):
        others = [inputs[j] for j in range(n_agents) if j != i]
        critic_ins.append(jnp.concatenate([obs_list[i]] + others, axis=2))
    return critic_ins


def reference_forward(obs_list, u_list, params):
    """Pure-JAX replica of ComaCritic.forward (return_q=True, return_all_q=False)."""
    w1, b1, w2, b2, w3, b3 = params
    critic_ins = _build_critic_inputs(obs_list, u_list)
    outs = []
    for i, c in enumerate(critic_ins):
        h = c @ w1[i] + b1[i]
        h = jnp.where(h > 0, h, NEG_SLOPE * h)
        h = h @ w2[i] + b2[i]
        h = jnp.where(h > 0, h, NEG_SLOPE * h)
        q_all = h @ w3[i] + b3[i]
        idx = jnp.argmax(u_list[i], axis=2)                      # [B, T]
        q = jnp.take_along_axis(q_all, idx[..., None], axis=2)   # [B, T, 1]
        outs.append(q)
    return outs


if __name__ == "__main__":
    # Small shapes consistent with the module: per-agent obs [B, T, obs_shape],
    # per-agent one-hot action [B, T, n_actions].
    n_agents, n_actions, obs_shape, hidden = 3, 5, 10, 32
    B, T = 2, 8
    din = obs_shape + (obs_shape + n_actions) * (n_agents - 1)   # critic_inputs_shape

    key = jax.random.PRNGKey(0)
    k_obs, k_act, k_par = jax.random.split(key, 3)

    obs_keys = jax.random.split(k_obs, n_agents)
    act_keys = jax.random.split(k_act, n_agents)
    obs_list = [jax.random.normal(obs_keys[i], (B, T, obs_shape), jnp.float32)
                for i in range(n_agents)]
    u_list = [jax.nn.one_hot(
                  jax.random.randint(act_keys[i], (B, T), 0, n_actions),
                  n_actions, dtype=jnp.float32)
              for i in range(n_agents)]

    params = init_params(k_par, n_agents, din, hidden, n_actions)

    q_vals = coma_critic_forward(obs_list, u_list, params)
    q_vals = [jax.block_until_ready(q) for q in q_vals]

    q_ref = reference_forward(obs_list, u_list, params)
    for a in range(n_agents):
        assert q_vals[a].shape == (B, T, 1)
        # tolerance covers MXU accumulation-order differences of the packed fc1
        assert jnp.allclose(q_vals[a], q_ref[a], atol=1e-4, rtol=1e-4), \
            f"mismatch for agent {a}"

    print("KERNEL_OK")
</pallas_src>

<mosaic_0001>
module attributes {stable_mosaic.version = 11 : i64} {
  func.func @coma_critic_kernel(%arg0: i32, %arg1: memref<48x16xf32, #tpu.memory_space<vmem>>, %arg2: memref<3x5x16xf32, #tpu.memory_space<vmem>>, %arg3: memref<3x32x48xf32, #tpu.memory_space<vmem>>, %arg4: memref<3x32x1xf32, #tpu.memory_space<vmem>>, %arg5: memref<3x32x32xf32, #tpu.memory_space<vmem>>, %arg6: memref<3x32x1xf32, #tpu.memory_space<vmem>>, %arg7: memref<3x5x32xf32, #tpu.memory_space<vmem>>, %arg8: memref<3x5x1xf32, #tpu.memory_space<vmem>>, %arg9: memref<3x1x16xf32, #tpu.memory_space<vmem>>) attributes {dimension_semantics = [#tpu.dimension_semantics<parallel>], iteration_bounds = array<i64: 1>, scalar_prefetch = 0 : i64, scratch_operands = 0 : i64, tpu.core_type = #tpu.core_type<tc>, window_params = [{transform_indices = @transform_0, window_bounds = array<i64: 48, 16>}, {transform_indices = @transform_1, window_bounds = array<i64: 3, 5, 16>}, {pipeline_mode = #tpu.pipeline_mode<synchronous>, transform_indices = @transform_2, window_bounds = array<i64: 3, 32, 48>}, {pipeline_mode = #tpu.pipeline_mode<synchronous>, transform_indices = @transform_3, window_bounds = array<i64: 3, 32, 1>}, {pipeline_mode = #tpu.pipeline_mode<synchronous>, transform_indices = @transform_4, window_bounds = array<i64: 3, 32, 32>}, {pipeline_mode = #tpu.pipeline_mode<synchronous>, transform_indices = @transform_5, window_bounds = array<i64: 3, 32, 1>}, {pipeline_mode = #tpu.pipeline_mode<synchronous>, transform_indices = @transform_6, window_bounds = array<i64: 3, 5, 32>}, {pipeline_mode = #tpu.pipeline_mode<synchronous>, transform_indices = @transform_7, window_bounds = array<i64: 3, 5, 1>}, {transform_indices = @transform_8, window_bounds = array<i64: 3, 1, 16>}]} {
    %c0 = arith.constant 0 : index
    %c0_0 = arith.constant 0 : index
    %0 = vector.load %arg1[%c0, %c0_0] : memref<48x16xf32, #tpu.memory_space<vmem>>, vector<48x16xf32>
    %c0_1 = arith.constant 0 : index
    %c0_2 = arith.constant 0 : index
    %c0_3 = arith.constant 0 : index
    %1 = vector.load %arg3[%c0_1, %c0_2, %c0_3] : memref<3x32x48xf32, #tpu.memory_space<vmem>>, vector<1x32x48xf32>
    %2 = vector.shape_cast %1 : vector<1x32x48xf32> to vector<32x48xf32>
    %cst = arith.constant dense<0.000000e+00> : vector<32x16xf32>
    %3 = tpu.matmul %2, %0, %cst {dimension_numbers = #tpu.dot_dimension_numbers<[1], [0], [0], [1], [0, 0, 1, 1], [], []>} : vector<32x48xf32>, vector<48x16xf32>, vector<32x16xf32> -> vector<32x16xf32>
    %c0_4 = arith.constant 0 : index
    %c0_5 = arith.constant 0 : index
    %c0_6 = arith.constant 0 : index
    %4 = vector.load %arg4[%c0_4, %c0_5, %c0_6] : memref<3x32x1xf32, #tpu.memory_space<vmem>>, vector<1x32x1xf32>
    %5 = vector.shape_cast %4 : vector<1x32x1xf32> to vector<32x1xf32>
    %6 = vector.broadcast %5 : vector<32x1xf32> to vector<32x16xf32>
    %7 = arith.addf %3, %6 : vector<32x16xf32>
    %cst_7 = arith.constant 0.00999999977 : f32
    %8 = vector.broadcast %cst_7 : f32 to vector<32x16xf32>
    %9 = arith.mulf %8, %7 : vector<32x16xf32>
    %10 = arith.maximumf %7, %9 : vector<32x16xf32>
    %c0_8 = arith.constant 0 : index
    %c0_9 = arith.constant 0 : index
    %c0_10 = arith.constant 0 : index
    %11 = vector.load %arg5[%c0_8, %c0_9, %c0_10] : memref<3x32x32xf32, #tpu.memory_space<vmem>>, vector<1x32x32xf32>
    %12 = vector.shape_cast %11 : vector<1x32x32xf32> to vector<32x32xf32>
    %cst_11 = arith.constant dense<0.000000e+00> : vector<32x16xf32>
    %13 = tpu.matmul %12, %10, %cst_11 {dimension_numbers = #tpu.dot_dimension_numbers<[1], [0], [0], [1], [0, 0, 1, 1], [], []>} : vector<32x32xf32>, vector<32x16xf32>, vector<32x16xf32> -> vector<32x16xf32>
    %c0_12 = arith.constant 0 : index
    %c0_13 = arith.constant 0 : index
    %c0_14 = arith.constant 0 : index
    %14 = vector.load %arg6[%c0_12, %c0_13, %c0_14] : memref<3x32x1xf32, #tpu.memory_space<vmem>>, vector<1x32x1xf32>
    %15 = vector.shape_cast %14 : vector<1x32x1xf32> to vector<32x1xf32>
    %16 = vector.broadcast %15 : vector<32x1xf32> to vector<32x16xf32>
    %17 = arith.addf %13, %16 : vector<32x16xf32>
    %cst_15 = arith.constant 0.00999999977 : f32
    %18 = vector.broadcast %cst_15 : f32 to vector<32x16xf32>
    %19 = arith.mulf %18, %17 : vector<32x16xf32>
    %20 = arith.maximumf %17, %19 : vector<32x16xf32>
    %c0_16 = arith.constant 0 : index
    %c0_17 = arith.constant 0 : index
    %c0_18 = arith.constant 0 : index
    %21 = vector.load %arg7[%c0_16, %c0_17, %c0_18] : memref<3x5x32xf32, #tpu.memory_space<vmem>>, vector<1x5x32xf32>
    %22 = vector.shape_cast %21 : vector<1x5x32xf32> to vector<5x32xf32>
    %cst_19 = arith.constant dense<0.000000e+00> : vector<5x16xf32>
    %23 = tpu.matmul %22, %20, %cst_19 {dimension_numbers = #tpu.dot_dimension_numbers<[1], [0], [0], [1], [0, 0, 1, 1], [], []>} : vector<5x32xf32>, vector<32x16xf32>, vector<5x16xf32> -> vector<5x16xf32>
    %c0_20 = arith.constant 0 : index
    %c0_21 = arith.constant 0 : index
    %c0_22 = arith.constant 0 : index
    %24 = vector.load %arg8[%c0_20, %c0_21, %c0_22] : memref<3x5x1xf32, #tpu.memory_space<vmem>>, vector<1x5x1xf32>
    %25 = vector.shape_cast %24 : vector<1x5x1xf32> to vector<5x1xf32>
    %26 = vector.broadcast %25 : vector<5x1xf32> to vector<5x16xf32>
    %27 = arith.addf %23, %26 : vector<5x16xf32>
    %c0_23 = arith.constant 0 : index
    %c0_24 = arith.constant 0 : index
    %c0_25 = arith.constant 0 : index
    %28 = vector.load %arg2[%c0_23, %c0_24, %c0_25] : memref<3x5x16xf32, #tpu.memory_space<vmem>>, vector<1x5x16xf32>
    %29 = vector.shape_cast %28 : vector<1x5x16xf32> to vector<5x16xf32>
    %30 = arith.mulf %27, %29 : vector<5x16xf32>
    %cst_26 = arith.constant dense<0.000000e+00> : vector<16xf32>
    %31 = vector.multi_reduction <add>, %30, %cst_26 [0] : vector<5x16xf32> to vector<16xf32>
    %32 = vector.shape_cast %31 : vector<16xf32> to vector<1x16xf32>
    %cst_27 = arith.constant dense<0.000000e+00> : vector<16xf32>
    %33 = vector.multi_reduction <add>, %29, %cst_27 [0] : vector<5x16xf32> to vector<16xf32>
    %34 = vector.shape_cast %33 : vector<16xf32> to vector<1x16xf32>
    %cst_28 = arith.constant 1.000000e+00 : f32
    %35 = vector.broadcast %cst_28 : f32 to vector<1x16xf32>
    %36 = arith.subf %35, %34 : vector<1x16xf32>
    %37 = vector.extract_strided_slice %27 {offsets = [0, 0], sizes = [1, 16], strides = [1, 1]} : vector<5x16xf32> to vector<1x16xf32>
    %38 = arith.mulf %36, %37 : vector<1x16xf32>
    %39 = arith.addf %32, %38 : vector<1x16xf32>
    %c0_29 = arith.constant 0 : index
    %c0_30 = arith.constant 0 : index
    %c0_31 = arith.constant 0 : index
    %40 = vector.load %arg9[%c0_29, %c0_30, %c0_31] : memref<3x1x16xf32, #tpu.memory_space<vmem>>, vector<1x1x16xf32>
    %41 = vector.shape_cast %40 : vector<1x1x16xf32> to vector<1x16xf32>
    %42 = vector.shape_cast %39 : vector<1x16xf32> to vector<1x1x16xf32>
    tpu.vector_store %arg9[%c0_29, %c0_30, %c0_31], %42 {strides = array<i32>} : memref<3x1x16xf32, #tpu.memory_space<vmem>>, vector<1x1x16xf32>,
    %c1 = arith.constant 1 : index
    %c0_32 = arith.constant 0 : index
    %c0_33 = arith.constant 0 : index
    %43 = vector.load %arg3[%c1, %c0_32, %c0_33] : memref<3x32x48xf32, #tpu.memory_space<vmem>>, vector<1x32x48xf32>
    %44 = vector.shape_cast %43 : vector<1x32x48xf32> to vector<32x48xf32>
    %cst_34 = arith.constant dense<0.000000e+00> : vector<32x16xf32>
    %45 = tpu.matmul %44, %0, %cst_34 {dimension_numbers = #tpu.dot_dimension_numbers<[1], [0], [0], [1], [0, 0, 1, 1], [], []>} : vector<32x48xf32>, vector<48x16xf32>, vector<32x16xf32> -> vector<32x16xf32>
    %c1_35 = arith.constant 1 : index
    %c0_36 = arith.constant 0 : index
    %c0_37 = arith.constant 0 : index
    %46 = vector.load %arg4[%c1_35, %c0_36, %c0_37] : memref<3x32x1xf32, #tpu.memory_space<vmem>>, vector<1x32x1xf32>
    %47 = vector.shape_cast %46 : vector<1x32x1xf32> to vector<32x1xf32>
    %48 = vector.broadcast %47 : vector<32x1xf32> to vector<32x16xf32>
    %49 = arith.addf %45, %48 : vector<32x16xf32>
    %cst_38 = arith.constant 0.00999999977 : f32
    %50 = vector.broadcast %cst_38 : f32 to vector<32x16xf32>
    %51 = arith.mulf %50, %49 : vector<32x16xf32>
    %52 = arith.maximumf %49, %51 : vector<32x16xf32>
    %c1_39 = arith.constant 1 : index
    %c0_40 = arith.constant 0 : index
    %c0_41 = arith.constant 0 : index
    %53 = vector.load %arg5[%c1_39, %c0_40, %c0_41] : memref<3x32x32xf32, #tpu.memory_space<vmem>>, vector<1x32x32xf32>
    %54 = vector.shape_cast %53 : vector<1x32x32xf32> to vector<32x32xf32>
    %cst_42 = arith.constant dense<0.000000e+00> : vector<32x16xf32>
    %55 = tpu.matmul %54, %52, %cst_42 {dimension_numbers = #tpu.dot_dimension_numbers<[1], [0], [0], [1], [0, 0, 1, 1], [], []>} : vector<32x32xf32>, vector<32x16xf32>, vector<32x16xf32> -> vector<32x16xf32>
    %c1_43 = arith.constant 1 : index
    %c0_44 = arith.constant 0 : index
    %c0_45 = arith.constant 0 : index
    %56 = vector.load %arg6[%c1_43, %c0_44, %c0_45] : memref<3x32x1xf32, #tpu.memory_space<vmem>>, vector<1x32x1xf32>
    %57 = vector.shape_cast %56 : vector<1x32x1xf32> to vector<32x1xf32>
    %58 = vector.broadcast %57 : vector<32x1xf32> to vector<32x16xf32>
    %59 = arith.addf %55, %58 : vector<32x16xf32>
    %cst_46 = arith.constant 0.00999999977 : f32
    %60 = vector.broadcast %cst_46 : f32 to vector<32x16xf32>
    %61 = arith.mulf %60, %59 : vector<32x16xf32>
    %62 = arith.maximumf %59, %61 : vector<32x16xf32>
    %c1_47 = arith.constant 1 : index
    %c0_48 = arith.constant 0 : index
    %c0_49 = arith.constant 0 : index
    %63 = vector.load %arg7[%c1_47, %c0_48, %c0_49] : memref<3x5x32xf32, #tpu.memory_space<vmem>>, vector<1x5x32xf32>
    %64 = vector.shape_cast %63 : vector<1x5x32xf32> to vector<5x32xf32>
    %cst_50 = arith.constant dense<0.000000e+00> : vector<5x16xf32>
    %65 = tpu.matmul %64, %62, %cst_50 {dimension_numbers = #tpu.dot_dimension_numbers<[1], [0], [0], [1], [0, 0, 1, 1], [], []>} : vector<5x32xf32>, vector<32x16xf32>, vector<5x16xf32> -> vector<5x16xf32>
    %c1_51 = arith.constant 1 : index
    %c0_52 = arith.constant 0 : index
    %c0_53 = arith.constant 0 : index
    %66 = vector.load %arg8[%c1_51, %c0_52, %c0_53] : memref<3x5x1xf32, #tpu.memory_space<vmem>>, vector<1x5x1xf32>
    %67 = vector.shape_cast %66 : vector<1x5x1xf32> to vector<5x1xf32>
    %68 = vector.broadcast %67 : vector<5x1xf32> to vector<5x16xf32>
    %69 = arith.addf %65, %68 : vector<5x16xf32>
    %c1_54 = arith.constant 1 : index
    %c0_55 = arith.constant 0 : index
    %c0_56 = arith.constant 0 : index
    %70 = vector.load %arg2[%c1_54, %c0_55, %c0_56] : memref<3x5x16xf32, #tpu.memory_space<vmem>>, vector<1x5x16xf32>
    %71 = vector.shape_cast %70 : vector<1x5x16xf32> to vector<5x16xf32>
    %72 = arith.mulf %69, %71 : vector<5x16xf32>
    %cst_57 = arith.constant dense<0.000000e+00> : vector<16xf32>
    %73 = vector.multi_reduction <add>, %72, %cst_57 [0] : vector<5x16xf32> to vector<16xf32>
    %74 = vector.shape_cast %73 : vector<16xf32> to vector<1x16xf32>
    %cst_58 = arith.constant dense<0.000000e+00> : vector<16xf32>
    %75 = vector.multi_reduction <add>, %71, %cst_58 [0] : vector<5x16xf32> to vector<16xf32>
    %76 = vector.shape_cast %75 : vector<16xf32> to vector<1x16xf32>
    %cst_59 = arith.constant 1.000000e+00 : f32
    %77 = vector.broadcast %cst_59 : f32 to vector<1x16xf32>
    %78 = arith.subf %77, %76 : vector<1x16xf32>
    %79 = vector.extract_strided_slice %69 {offsets = [0, 0], sizes = [1, 16], strides = [1, 1]} : vector<5x16xf32> to vector<1x16xf32>
    %80 = arith.mulf %78, %79 : vector<1x16xf32>
    %81 = arith.addf %74, %80 : vector<1x16xf32>
    %c1_60 = arith.constant 1 : index
    %c0_61 = arith.constant 0 : index
    %c0_62 = arith.constant 0 : index
    %82 = vector.load %arg9[%c1_60, %c0_61, %c0_62] : memref<3x1x16xf32, #tpu.memory_space<vmem>>, vector<1x1x16xf32>
    %83 = vector.shape_cast %82 : vector<1x1x16xf32> to vector<1x16xf32>
    %84 = vector.shape_cast %81 : vector<1x16xf32> to vector<1x1x16xf32>
    tpu.vector_store %arg9[%c1_60, %c0_61, %c0_62], %84 {strides = array<i32>} : memref<3x1x16xf32, #tpu.memory_space<vmem>>, vector<1x1x16xf32>,
    %c2 = arith.constant 2 : index
    %c0_63 = arith.constant 0 : index
    %c0_64 = arith.constant 0 : index
    %85 = vector.load %arg3[%c2, %c0_63, %c0_64] : memref<3x32x48xf32, #tpu.memory_space<vmem>>, vector<1x32x48xf32>
    %86 = vector.shape_cast %85 : vector<1x32x48xf32> to vector<32x48xf32>
    %cst_65 = arith.constant dense<0.000000e+00> : vector<32x16xf32>
    %87 = tpu.matmul %86, %0, %cst_65 {dimension_numbers = #tpu.dot_dimension_numbers<[1], [0], [0], [1], [0, 0, 1, 1], [], []>} : vector<32x48xf32>, vector<48x16xf32>, vector<32x16xf32> -> vector<32x16xf32>
    %c2_66 = arith.constant 2 : index
    %c0_67 = arith.constant 0 : index
    %c0_68 = arith.constant 0 : index
    %88 = vector.load %arg4[%c2_66, %c0_67, %c0_68] : memref<3x32x1xf32, #tpu.memory_space<vmem>>, vector<1x32x1xf32>
    %89 = vector.shape_cast %88 : vector<1x32x1xf32> to vector<32x1xf32>
    %90 = vector.broadcast %89 : vector<32x1xf32> to vector<32x16xf32>
    %91 = arith.addf %87, %90 : vector<32x16xf32>
    %cst_69 = arith.constant 0.00999999977 : f32
    %92 = vector.broadcast %cst_69 : f32 to vector<32x16xf32>
    %93 = arith.mulf %92, %91 : vector<32x16xf32>
    %94 = arith.maximumf %91, %93 : vector<32x16xf32>
    %c2_70 = arith.constant 2 : index
    %c0_71 = arith.constant 0 : index
    %c0_72 = arith.constant 0 : index
    %95 = vector.load %arg5[%c2_70, %c0_71, %c0_72] : memref<3x32x32xf32, #tpu.memory_space<vmem>>, vector<1x32x32xf32>
    %96 = vector.shape_cast %95 : vector<1x32x32xf32> to vector<32x32xf32>
    %cst_73 = arith.constant dense<0.000000e+00> : vector<32x16xf32>
    %97 = tpu.matmul %96, %94, %cst_73 {dimension_numbers = #tpu.dot_dimension_numbers<[1], [0], [0], [1], [0, 0, 1, 1], [], []>} : vector<32x32xf32>, vector<32x16xf32>, vector<32x16xf32> -> vector<32x16xf32>
    %c2_74 = arith.constant 2 : index
    %c0_75 = arith.constant 0 : index
    %c0_76 = arith.constant 0 : index
    %98 = vector.load %arg6[%c2_74, %c0_75, %c0_76] : memref<3x32x1xf32, #tpu.memory_space<vmem>>, vector<1x32x1xf32>
    %99 = vector.shape_cast %98 : vector<1x32x1xf32> to vector<32x1xf32>
    %100 = vector.broadcast %99 : vector<32x1xf32> to vector<32x16xf32>
    %101 = arith.addf %97, %100 : vector<32x16xf32>
    %cst_77 = arith.constant 0.00999999977 : f32
    %102 = vector.broadcast %cst_77 : f32 to vector<32x16xf32>
    %103 = arith.mulf %102, %101 : vector<32x16xf32>
    %104 = arith.maximumf %101, %103 : vector<32x16xf32>
    %c2_78 = arith.constant 2 : index
    %c0_79 = arith.constant 0 : index
    %c0_80 = arith.constant 0 : index
    %105 = vector.load %arg7[%c2_78, %c0_79, %c0_80] : memref<3x5x32xf32, #tpu.memory_space<vmem>>, vector<1x5x32xf32>
    %106 = vector.shape_cast %105 : vector<1x5x32xf32> to vector<5x32xf32>
    %cst_81 = arith.constant dense<0.000000e+00> : vector<5x16xf32>
    %107 = tpu.matmul %106, %104, %cst_81 {dimension_numbers = #tpu.dot_dimension_numbers<[1], [0], [0], [1], [0, 0, 1, 1], [], []>} : vector<5x32xf32>, vector<32x16xf32>, vector<5x16xf32> -> vector<5x16xf32>
    %c2_82 = arith.constant 2 : index
    %c0_83 = arith.constant 0 : index
    %c0_84 = arith.constant 0 : index
    %108 = vector.load %arg8[%c2_82, %c0_83, %c0_84] : memref<3x5x1xf32, #tpu.memory_space<vmem>>, vector<1x5x1xf32>
    %109 = vector.shape_cast %108 : vector<1x5x1xf32> to vector<5x1xf32>
    %110 = vector.broadcast %109 : vector<5x1xf32> to vector<5x16xf32>
    %111 = arith.addf %107, %110 : vector<5x16xf32>
    %c2_85 = arith.constant 2 : index
    %c0_86 = arith.constant 0 : index
    %c0_87 = arith.constant 0 : index
    %112 = vector.load %arg2[%c2_85, %c0_86, %c0_87] : memref<3x5x16xf32, #tpu.memory_space<vmem>>, vector<1x5x16xf32>
    %113 = vector.shape_cast %112 : vector<1x5x16xf32> to vector<5x16xf32>
    %114 = arith.mulf %111, %113 : vector<5x16xf32>
    %cst_88 = arith.constant dense<0.000000e+00> : vector<16xf32>
    %115 = vector.multi_reduction <add>, %114, %cst_88 [0] : vector<5x16xf32> to vector<16xf32>
    %116 = vector.shape_cast %115 : vector<16xf32> to vector<1x16xf32>
    %cst_89 = arith.constant dense<0.000000e+00> : vector<16xf32>
    %117 = vector.multi_reduction <add>, %113, %cst_89 [0] : vector<5x16xf32> to vector<16xf32>
    %118 = vector.shape_cast %117 : vector<16xf32> to vector<1x16xf32>
    %cst_90 = arith.constant 1.000000e+00 : f32
    %119 = vector.broadcast %cst_90 : f32 to vector<1x16xf32>
    %120 = arith.subf %119, %118 : vector<1x16xf32>
    %121 = vector.extract_strided_slice %111 {offsets = [0, 0], sizes = [1, 16], strides = [1, 1]} : vector<5x16xf32> to vector<1x16xf32>
    %122 = arith.mulf %120, %121 : vector<1x16xf32>
    %123 = arith.addf %116, %122 : vector<1x16xf32>
    %c2_91 = arith.constant 2 : index
    %c0_92 = arith.constant 0 : index
    %c0_93 = arith.constant 0 : index
    %124 = vector.load %arg9[%c2_91, %c0_92, %c0_93] : memref<3x1x16xf32, #tpu.memory_space<vmem>>, vector<1x1x16xf32>
    %125 = vector.shape_cast %124 : vector<1x1x16xf32> to vector<1x16xf32>
    %126 = vector.shape_cast %123 : vector<1x16xf32> to vector<1x1x16xf32>
    tpu.vector_store %arg9[%c2_91, %c0_92, %c0_93], %126 {strides = array<i32>} : memref<3x1x16xf32, #tpu.memory_space<vmem>>, vector<1x1x16xf32>,
    return
  }
  func.func @transform_0(%arg0: i32) -> (i32, i32) {
    %c0_i32 = arith.constant 0 : i32
    %c0_i32_0 = arith.constant 0 : i32
    return %c0_i32, %arg0 : i32, i32
  }
  func.func @transform_1(%arg0: i32) -> (i32, i32, i32) {
    %c0_i32 = arith.constant 0 : i32
    %c0_i32_0 = arith.constant 0 : i32
    %c0_i32_1 = arith.constant 0 : i32
    return %c0_i32, %c0_i32_0, %arg0 : i32, i32, i32
  }
  func.func @transform_2(%arg0: i32) -> (i32, i32, i32) {
    %c0_i32 = arith.constant 0 : i32
    %c0_i32_0 = arith.constant 0 : i32
    %c0_i32_1 = arith.constant 0 : i32
    %c0_i32_2 = arith.constant 0 : i32
    return %c0_i32, %c0_i32_0, %c0_i32_1 : i32, i32, i32
  }
  func.func @transform_3(%arg0: i32) -> (i32, i32, i32) {
    %c0_i32 = arith.constant 0 : i32
    %c0_i32_0 = arith.constant 0 : i32
    %c0_i32_1 = arith.constant 0 : i32
    %c0_i32_2 = arith.constant 0 : i32
    return %c0_i32, %c0_i32_0, %c0_i32_1 : i32, i32, i32
  }
  func.func @transform_4(%arg0: i32) -> (i32, i32, i32) {
    %c0_i32 = arith.constant 0 : i32
    %c0_i32_0 = arith.constant 0 : i32
    %c0_i32_1 = arith.constant 0 : i32
    %c0_i32_2 = arith.constant 0 : i32
    return %c0_i32, %c0_i32_0, %c0_i32_1 : i32, i32, i32
  }
  func.func @transform_5(%arg0: i32) -> (i32, i32, i32) {
    %c0_i32 = arith.constant 0 : i32
    %c0_i32_0 = arith.constant 0 : i32
    %c0_i32_1 = arith.constant 0 : i32
    %c0_i32_2 = arith.constant 0 : i32
    return %c0_i32, %c0_i32_0, %c0_i32_1 : i32, i32, i32
  }
  func.func @transform_6(%arg0: i32) -> (i32, i32, i32) {
    %c0_i32 = arith.constant 0 : i32
    %c0_i32_0 = arith.constant 0 : i32
    %c0_i32_1 = arith.constant 0 : i32
    %c0_i32_2 = arith.constant 0 : i32
    return %c0_i32, %c0_i32_0, %c0_i32_1 : i32, i32, i32
  }
  func.func @transform_7(%arg0: i32) -> (i32, i32, i32) {
    %c0_i32 = arith.constant 0 : i32
    %c0_i32_0 = arith.constant 0 : i32
    %c0_i32_1 = arith.constant 0 : i32
    %c0_i32_2 = arith.constant 0 : i32
    return %c0_i32, %c0_i32_0, %c0_i32_1 : i32, i32, i32
  }
  func.func @transform_8(%arg0: i32) -> (i32, i32, i32) {
    %c0_i32 = arith.constant 0 : i32
    %c0_i32_0 = arith.constant 0 : i32
    %c0_i32_1 = arith.constant 0 : i32
    return %c0_i32, %c0_i32_0, %arg0 : i32, i32, i32
  }
}

</mosaic_0001>

<llo_original>
// kernel: tpu_custom_call.1
$region0: #{tpu_custom_call.1}
  #allocation0 [shape = 'u32[]', space=smem, size = 0x4, offset = 0x4, fixed_abs, tag = 'smem constant byte address 0x4 - core index']
  #allocation1 [shape = 'u32[72,128]{1,0:T(1,128)}', space=vmem, size = 0x9000, scoped, tag = 'internal scratch']
  %s0 = inlined_call_operand.vmem [shape: f32[48,16], index: 0, kind: input, shape index: {}]
  %s1 = inlined_call_operand.vmem [shape: f32[3,5,16], index: 1, kind: input, shape index: {}]
  %s2 = inlined_call_operand.vmem [shape: f32[3,32,48], index: 2, kind: input, shape index: {}]
  %s3 = inlined_call_operand.vmem [shape: f32[3,32,1], index: 3, kind: input, shape index: {}]
  %s4 = inlined_call_operand.vmem [shape: f32[3,32,32], index: 4, kind: input, shape index: {}]
  %s5 = inlined_call_operand.vmem [shape: f32[3,32,1], index: 5, kind: input, shape index: {}]
  %s6 = inlined_call_operand.vmem [shape: f32[3,5,32], index: 6, kind: input, shape index: {}]
  %s7 = inlined_call_operand.vmem [shape: f32[3,5,1], index: 7, kind: input, shape index: {}]
  %s8 = inlined_call_operand.hbm [shape: f32[3,1,16], index: 8, kind: output, shape index: {}]
  %s9 = sld [smem:[#allocation0]]
  $region42: #{tpu_custom_call.1} parent=0
    _
  %s11 = ssub.s32 1, %s9
  %s12 = scalar_select 0, %s11, %s9
  $region1: #{tpu_custom_call.1} parent=0
    #allocation2 [shape = 'u8[1536]{0}', space=vmem, size = 0x800, scoped, tag = 'output window, operand 0, single buffered']
    #allocation3 [shape = 's32[1]{0}', space=sflag, size = 0x4, scoped, tag = 'scoped memory for tpu_custom_call.1']
    %13 = vsyncpa [#allocation3], 0
    // Predicated region
    $region2: #{tpu_custom_call.1} parent=1 // pred_check
      _
    $region3: #{tpu_custom_call.1} parent=1 // pred_check_branch
      %15 = sbr.rel (0) target = $region5
    $region4: #{tpu_custom_call.1} parent=1 // pred_region
      _
    $region5: #{tpu_custom_call.1} parent=1 // pred_fallthru
      _
    // Predicated region
    $region6: #{tpu_custom_call.1} parent=1 // pred_check
      _
    $region7: #{tpu_custom_call.1} parent=1 // pred_check_branch
      %17 = sbr.rel (0) target = $region9
    $region8: #{tpu_custom_call.1} parent=1 // pred_region
      _
    $region9: #{tpu_custom_call.1} parent=1 // pred_fallthru
      _
    // Predicated region
    $region10: #{tpu_custom_call.1} parent=1 // pred_check
      _
    $region11: #{tpu_custom_call.1} parent=1 // pred_check_branch
      %19 = sbr.rel (0) target = $region13
    $region12: #{tpu_custom_call.1} parent=1 // pred_region
      _
    $region13: #{tpu_custom_call.1} parent=1 // pred_fallthru
      _
    // Predicated region
    $region14: #{tpu_custom_call.1} parent=1 // pred_check
      _
    $region15: #{tpu_custom_call.1} parent=1 // pred_check_branch
      %21 = sbr.rel (0) target = $region17
    $region16: #{tpu_custom_call.1} parent=1 // pred_region
      _
    $region17: #{tpu_custom_call.1} parent=1 // pred_fallthru
      _
    // Predicated region
    $region18: #{tpu_custom_call.1} parent=1 // pred_check
      _
    $region19: #{tpu_custom_call.1} parent=1 // pred_check_branch
      %23 = sbr.rel (0) target = $region21
    $region20: #{tpu_custom_call.1} parent=1 // pred_region
      _
    $region21: #{tpu_custom_call.1} parent=1 // pred_fallthru
      _
    // Predicated region
    $region22: #{tpu_custom_call.1} parent=1 // pred_check
      _
    $region23: #{tpu_custom_call.1} parent=1 // pred_check_branch
      %25 = sbr.rel (0) target = $region25
    $region24: #{tpu_custom_call.1} parent=1 // pred_region
      _
    $region25: #{tpu_custom_call.1} parent=1 // pred_fallthru
      _
    // Predicated region
    $region26: #{tpu_custom_call.1} parent=1 // pred_check
      _
    $region27: #{tpu_custom_call.1} parent=1 // pred_check_branch
      %27 = sbr.rel (0) target = $region29
    $region28: #{tpu_custom_call.1} parent=1 // pred_region
      _
    $region29: #{tpu_custom_call.1} parent=1 // pred_fallthru
      _
    // Predicated region
    $region30: #{tpu_custom_call.1} parent=1 // pred_check
      _
    $region31: #{tpu_custom_call.1} parent=1 // pred_check_branch
      %29 = sbr.rel (0) target = $region33
    $region32: #{tpu_custom_call.1} parent=1 // pred_region
      _
    $region33: #{tpu_custom_call.1} parent=1 // pred_fallthru
      _
    %v30 = vld [vmem:[%s0] sm:$0xff]
    %v31 = vld [vmem:[%s0 + $0x8] sm:$0xff]
    %v32 = vld [vmem:[%s0 + $0x10] sm:$0xff]
    %v33 = vld [vmem:[%s0 + $0x18] sm:$0xff]
    %v34 = vld [vmem:[%s0 + $0x20] sm:$0xff]
    %v35 = vld [vmem:[%s0 + $0x28] sm:$0xff]
    %v36 = vld [vmem:[%s2] sm:$0xff]
    %v37 = vld [vmem:[%s2 + $0x8] sm:$0xff]
    %v38 = vld [vmem:[%s2 + $0x10] sm:$0xff]
    %v39 = vld [vmem:[%s2 + $0x18] sm:$0xff]
    %v40 = vld [vmem:[%s3] sm:$0xff]
    %v41 = vld [vmem:[%s3 + $0x8] sm:$0xff]
    %v42 = vld [vmem:[%s3 + $0x10] sm:$0xff]
    %v43 = vld [vmem:[%s3 + $0x18] sm:$0xff]
    %45 = vset.pattern.permute.xlu0 0
    %46 = vperm.xlu0 %45, %v40
    %v47 = vpop.permute.xlu0 %46
    %50 = vset.pattern.permute.xlu0 0
    %51 = vperm.xlu0 %50, %v41
    %v52 = vpop.permute.xlu0 %51
    %55 = vset.pattern.permute.xlu0 0
    %56 = vperm.xlu0 %55, %v42
    %v57 = vpop.permute.xlu0 %56
    %60 = vset.pattern.permute.xlu0 0
    %61 = vperm.xlu0 %60, %v43
    %v62 = vpop.permute.xlu0 %61
    %vm64 = vcmask 392192
    %v66 = vsel %vm64, %v36, 0
    %v69 = vsel %vm64, %v37, 0
    %v72 = vsel %vm64, %v38, 0
    %v75 = vsel %vm64, %v39, 0
    %77 = vmatpush.msra.mxu0 0.0
    %78 = vmatpush.msra.mxu0 0.0
    %79 = vmatpush.msra.mxu0 0.0
    %80 = vmatpush.msra.mxu0 0.0
    %81 = vmatpush.msra.mxu0 0.0
    %82 = vmatpush.msra.mxu0 0.0
    %83 = vmatpush.msra.mxu0 0.0
    %84 = vmatpush.msra.mxu0 0.0
    %85 = vmatpush.msra.mxu0 0.0
    %86 = vmatpush.msra.mxu0 0.0
    %87 = vmatpush.msra.mxu0 %v35
    %88 = vmatpush.msra.mxu0 %v34
    %89 = vmatpush.msra.mxu0 %v33
    %90 = vmatpush.msra.mxu0 %v32
    %91 = vmatpush.msra.mxu0 %v31
    %92 = vmatpush.msra.mxu0 %v30
    %93 = vmatmul.f32.gmra.mxu0 %v66
    %v94 = vpop.f32.mrf.mxu0
    %v95 = vadd.f32 %v47, %v94
    %96 = vmatmul.f32.gmra.mxu0 %v69
    %v97 = vpop.f32.mrf.mxu0
    %v98 = vadd.f32 %v52, %v97
    %99 = vmatmul.f32.gmra.mxu0 %v72
    %v100 = vpop.f32.mrf.mxu0
    %v101 = vadd.f32 %v57, %v100
    %102 = vmatmul.f32.gmra.mxu0 %v75
    %v103 = vpop.f32.mrf.mxu0
    %v104 = vadd.f32 %v62, %v103
    %105 = vdwg.mxu0
    %v106 = vmul.f32 %v95, 0.01
    %v107 = vmul.f32 %v98, 0.01
    %v108 = vmul.f32 %v101, 0.01
    %v109 = vmul.f32 %v104, 0.01
    %v110 = vmax.f32 %v95, %v106
    %v111 = vmax.f32 %v98, %v107
    %v112 = vmax.f32 %v101, %v108
    %v113 = vmax.f32 %v104, %v109
    %v114 = vld [vmem:[%s4] sm:$0xff]
    %v115 = vld [vmem:[%s4 + $0x8] sm:$0xff]
    %v116 = vld [vmem:[%s4 + $0x10] sm:$0xff]
    %v117 = vld [vmem:[%s4 + $0x18] sm:$0xff]
    %v118 = vld [vmem:[%s5] sm:$0xff]
    %v119 = vld [vmem:[%s5 + $0x8] sm:$0xff]
    %v120 = vld [vmem:[%s5 + $0x10] sm:$0xff]
    %v121 = vld [vmem:[%s5 + $0x18] sm:$0xff]
    %123 = vset.pattern.permute.xlu0 0
    %124 = vperm.xlu0 %123, %v118
    %v125 = vpop.permute.xlu0 %124
    %128 = vset.pattern.permute.xlu0 0
    %129 = vperm.xlu0 %128, %v119
    %v130 = vpop.permute.xlu0 %129
    %133 = vset.pattern.permute.xlu0 0
    %134 = vperm.xlu0 %133, %v120
    %v135 = vpop.permute.xlu0 %134
    %138 = vset.pattern.permute.xlu0 0
    %139 = vperm.xlu0 %138, %v121
    %v140 = vpop.permute.xlu0 %139
    %vm142 = vcmask 261120
    %v144 = vsel %vm142, %v114, 0
    %v147 = vsel %vm142, %v115, 0
    %v150 = vsel %vm142, %v116, 0
    %v153 = vsel %vm142, %v117, 0
    %155 = vmatpush.msra.mxu0 0.0
    %156 = vmatpush.msra.mxu0 0.0
    %157 = vmatpush.msra.mxu0 0.0
    %158 = vmatpush.msra.mxu0 0.0
    %159 = vmatpush.msra.mxu0 0.0
    %160 = vmatpush.msra.mxu0 0.0
    %161 = vmatpush.msra.mxu0 0.0
    %162 = vmatpush.msra.mxu0 0.0
    %163 = vmatpush.msra.mxu0 0.0
    %164 = vmatpush.msra.mxu0 0.0
    %165 = vmatpush.msra.mxu0 0.0
    %166 = vmatpush.msra.mxu0 0.0
    %167 = vmatpush.msra.mxu0 %v113
    %168 = vmatpush.msra.mxu0 %v112
    %169 = vmatpush.msra.mxu0 %v111
    %170 = vmatpush.msra.mxu0 %v110
    %171 = vmatmul.f32.gmra.mxu0 %v144
    %v172 = vpop.f32.mrf.mxu0
    %v173 = vadd.f32 %v125, %v172
    %174 = vmatmul.f32.gmra.mxu0 %v147
    %v175 = vpop.f32.mrf.mxu0
    %v176 = vadd.f32 %v130, %v175
    %177 = vmatmul.f32.gmra.mxu0 %v150
    %v178 = vpop.f32.mrf.mxu0
    %v179 = vadd.f32 %v135, %v178
    %180 = vmatmul.f32.gmra.mxu0 %v153
    %v181 = vpop.f32.mrf.mxu0
    %v182 = vadd.f32 %v140, %v181
    %183 = vdwg.mxu0
    %v184 = vmul.f32 %v173, 0.01
    %v185 = vmul.f32 %v176, 0.01
    %v186 = vmul.f32 %v179, 0.01
    %v187 = vmul.f32 %v182, 0.01
    %v188 = vmax.f32 %v173, %v184
    %v189 = vmax.f32 %v176, %v185
    %v190 = vmax.f32 %v179, %v186
    %v191 = vmax.f32 %v182, %v187
    %v192 = vld [vmem:[%s6] sm:$0x1f]
    %v193 = vld [vmem:[%s7] sm:$0x1f]
    %195 = vset.pattern.permute.xlu0 0
    %196 = vperm.xlu0 %195, %v193
    %v197 = vpop.permute.xlu0 %196
    %v200 = vsel %vm142, %v192, 0
    %202 = vmatpush.msra.mxu0 0.0
    %203 = vmatpush.msra.mxu0 0.0
    %204 = vmatpush.msra.mxu0 0.0
    %205 = vmatpush.msra.mxu0 0.0
    %206 = vmatpush.msra.mxu0 0.0
    %207 = vmatpush.msra.mxu0 0.0
    %208 = vmatpush.msra.mxu0 0.0
    %209 = vmatpush.msra.mxu0 0.0
    %210 = vmatpush.msra.mxu0 0.0
    %211 = vmatpush.msra.mxu0 0.0
    %212 = vmatpush.msra.mxu0 0.0
    %213 = vmatpush.msra.mxu0 0.0
    %214 = vmatpush.msra.mxu0 %v191
    %215 = vmatpush.msra.mxu0 %v190
    %216 = vmatpush.msra.mxu0 %v189
    %217 = vmatpush.msra.mxu0 %v188
    %218 = vmatmul.f32.gmra.mxu0 %v200
    %v219 = vpop.f32.mrf.mxu0
    %v220 = vadd.f32 %v197, %v219
    %221 = vdwg.mxu0
    %v222 = vld [vmem:[%s1] sm:$0x1f]
    %v223 = vmul.f32 %v220, %v222
    %vm224 = vcmask 126976
    %v225 = vsel %vm224, %v223, 0.0
    %v226 = vrot.slane %v225, 4
    %v227 = vadd.f32 %v225, %v226
    %v228 = vrot.slane %v227, 2
    %v229 = vadd.f32 %v227, %v228
    %v230 = vrot.slane %v229, 1
    %v231 = vadd.f32 %v229, %v230
    %v232 = vsel %vm224, %v222, 0.0
    %v233 = vrot.slane %v232, 4
    %v234 = vadd.f32 %v232, %v233
    %v235 = vrot.slane %v234, 2
    %v236 = vadd.f32 %v234, %v235
    %v237 = vrot.slane %v236, 1
    %v238 = vadd.f32 %v236, %v237
    %v239 = vsub.f32 1.0, %v238
    %v240 = vmul.f32 %v239, %v220
    %v241 = vadd.f32 %v231, %v240
    %vm242 = vcmask 122880
    %243 = vst.msk [vmem:[#allocation2] sm:$0x1] %vm242, %v241
    %s244 = scalar_lea.vmem %s2, 32
    %v245 = vld [vmem:[%s244] sm:$0xff]
    %v246 = vld [vmem:[%s244 + $0x8] sm:$0xff]
    %v247 = vld [vmem:[%s244 + $0x10] sm:$0xff]
    %v248 = vld [vmem:[%s244 + $0x18] sm:$0xff]
    %s249 = scalar_lea.vmem %s3, 32
    %v250 = vld [vmem:[%s249] sm:$0xff]
    %v251 = vld [vmem:[%s249 + $0x8] sm:$0xff]
    %v252 = vld [vmem:[%s249 + $0x10] sm:$0xff]
    %v253 = vld [vmem:[%s249 + $0x18] sm:$0xff]
    %255 = vset.pattern.permute.xlu0 0
    %256 = vperm.xlu0 %255, %v250
    %v257 = vpop.permute.xlu0 %256
    %260 = vset.pattern.permute.xlu0 0
    %261 = vperm.xlu0 %260, %v251
    %v262 = vpop.permute.xlu0 %261
    %265 = vset.pattern.permute.xlu0 0
    %266 = vperm.xlu0 %265, %v252
    %v267 = vpop.permute.xlu0 %266
    %270 = vset.pattern.permute.xlu0 0
    %271 = vperm.xlu0 %270, %v253
    %v272 = vpop.permute.xlu0 %271
    %v275 = vsel %vm64, %v245, 0
    %v278 = vsel %vm64, %v246, 0
    %v281 = vsel %vm64, %v247, 0
    %v284 = vsel %vm64, %v248, 0
    %286 = vmatpush.msra.mxu0 0.0
    %287 = vmatpush.msra.mxu0 0.0
    %288 = vmatpush.msra.mxu0 0.0
    %289 = vmatpush.msra.mxu0 0.0
    %290 = vmatpush.msra.mxu0 0.0
    %291 = vmatpush.msra.mxu0 0.0
    %292 = vmatpush.msra.mxu0 0.0
    %293 = vmatpush.msra.mxu0 0.0
    %294 = vmatpush.msra.mxu0 0.0
    %295 = vmatpush.msra.mxu0 0.0
    %296 = vmatpush.msra.mxu0 %v35
    %297 = vmatpush.msra.mxu0 %v34
    %298 = vmatpush.msra.mxu0 %v33
    %299 = vmatpush.msra.mxu0 %v32
    %300 = vmatpush.msra.mxu0 %v31
    %301 = vmatpush.msra.mxu0 %v30
    %302 = vmatmul.f32.gmra.mxu0 %v275
    %v303 = vpop.f32.mrf.mxu0
    %v304 = vadd.f32 %v257, %v303
    %305 = vmatmul.f32.gmra.mxu0 %v278
    %v306 = vpop.f32.mrf.mxu0
    %v307 = vadd.f32 %v262, %v306
    %308 = vmatmul.f32.gmra.mxu0 %v281
    %v309 = vpop.f32.mrf.mxu0
    %v310 = vadd.f32 %v267, %v309
    %311 = vmatmul.f32.gmra.mxu0 %v284
    %v312 = vpop.f32.mrf.mxu0
    %v313 = vadd.f32 %v272, %v312
    %314 = vdwg.mxu0
    %v315 = vmul.f32 %v304, 0.01
    %v316 = vmul.f32 %v307, 0.01
    %v317 = vmul.f32 %v310, 0.01
    %v318 = vmul.f32 %v313, 0.01
    %v319 = vmax.f32 %v304, %v315
    %v320 = vmax.f32 %v307, %v316
    %v321 = vmax.f32 %v310, %v317
    %v322 = vmax.f32 %v313, %v318
    %s323 = scalar_lea.vmem %s4, 32
    %v324 = vld [vmem:[%s323] sm:$0xff]
    %v325 = vld [vmem:[%s323 + $0x8] sm:$0xff]
    %v326 = vld [vmem:[%s323 + $0x10] sm:$0xff]
    %v327 = vld [vmem:[%s323 + $0x18] sm:$0xff]
    %s328 = scalar_lea.vmem %s5, 32
    %v329 = vld [vmem:[%s328] sm:$0xff]
    %v330 = vld [vmem:[%s328 + $0x8] sm:$0xff]
    %v331 = vld [vmem:[%s328 + $0x10] sm:$0xff]
    %v332 = vld [vmem:[%s328 + $0x18] sm:$0xff]
    %334 = vset.pattern.permute.xlu0 0
    %335 = vperm.xlu0 %334, %v329
    %v336 = vpop.permute.xlu0 %335
    %339 = vset.pattern.permute.xlu0 0
    %340 = vperm.xlu0 %339, %v330
    %v341 = vpop.permute.xlu0 %340
    %344 = vset.pattern.permute.xlu0 0
    %345 = vperm.xlu0 %344, %v331
    %v346 = vpop.permute.xlu0 %345
    %349 = vset.pattern.permute.xlu0 0
    %350 = vperm.xlu0 %349, %v332
    %v351 = vpop.permute.xlu0 %350
    %v354 = vsel %vm142, %v324, 0
    %v357 = vsel %vm142, %v325, 0
    %v360 = vsel %vm142, %v326, 0
    %v363 = vsel %vm142, %v327, 0
    %365 = vmatpush.msra.mxu0 0.0
    %366 = vmatpush.msra.mxu0 0.0
    %367 = vmatpush.msra.mxu0 0.0
    %368 = vmatpush.msra.mxu0 0.0
    %369 = vmatpush.msra.mxu0 0.0
    %370 = vmatpush.msra.mxu0 0.0
    %371 = vmatpush.msra.mxu0 0.0
    %372 = vmatpush.msra.mxu0 0.0
    %373 = vmatpush.msra.mxu0 0.0
    %374 = vmatpush.msra.mxu0 0.0
    %375 = vmatpush.msra.mxu0 0.0
    %376 = vmatpush.msra.mxu0 0.0
    %377 = vmatpush.msra.mxu0 %v322
    %378 = vmatpush.msra.mxu0 %v321
    %379 = vmatpush.msra.mxu0 %v320
    %380 = vmatpush.msra.mxu0 %v319
    %381 = vmatmul.f32.gmra.mxu0 %v354
    %v382 = vpop.f32.mrf.mxu0
    %v383 = vadd.f32 %v336, %v382
    %384 = vmatmul.f32.gmra.mxu0 %v357
    %v385 = vpop.f32.mrf.mxu0
    %v386 = vadd.f32 %v341, %v385
    %387 = vmatmul.f32.gmra.mxu0 %v360
    %v388 = vpop.f32.mrf.mxu0
    %v389 = vadd.f32 %v346, %v388
    %390 = vmatmul.f32.gmra.mxu0 %v363
    %v391 = vpop.f32.mrf.mxu0
    %v392 = vadd.f32 %v351, %v391
    %393 = vdwg.mxu0
    %v394 = vmul.f32 %v383, 0.01
    %v395 = vmul.f32 %v386, 0.01
    %v396 = vmul.f32 %v389, 0.01
    %v397 = vmul.f32 %v392, 0.01
    %v398 = vmax.f32 %v383, %v394
    %v399 = vmax.f32 %v386, %v395
    %v400 = vmax.f32 %v389, %v396
    %v401 = vmax.f32 %v392, %v397
    %s402 = scalar_lea.vmem %s6, 8
    %v403 = vld [vmem:[%s402] sm:$0x1f]
    %s404 = scalar_lea.vmem %s7, 8
    %v405 = vld [vmem:[%s404] sm:$0x1f]
    %407 = vset.pattern.permute.xlu0 0
    %408 = vperm.xlu0 %407, %v405
    %v409 = vpop.permute.xlu0 %408
    %v412 = vsel %vm142, %v403, 0
    %414 = vmatpush.msra.mxu0 0.0
    %415 = vmatpush.msra.mxu0 0.0
    %416 = vmatpush.msra.mxu0 0.0
    %417 = vmatpush.msra.mxu0 0.0
    %418 = vmatpush.msra.mxu0 0.0
    %419 = vmatpush.msra.mxu0 0.0
    %420 = vmatpush.msra.mxu0 0.0
    %421 = vmatpush.msra.mxu0 0.0
    %422 = vmatpush.msra.mxu0 0.0
    %423 = vmatpush.msra.mxu0 0.0
    %424 = vmatpush.msra.mxu0 0.0
    %425 = vmatpush.msra.mxu0 0.0
    %426 = vmatpush.msra.mxu0 %v401
    %427 = vmatpush.msra.mxu0 %v400
    %428 = vmatpush.msra.mxu0 %v399
    %429 = vmatpush.msra.mxu0 %v398
    %430 = vmatmul.f32.gmra.mxu0 %v412
    %v431 = vpop.f32.mrf.mxu0
    %v432 = vadd.f32 %v409, %v431
    %433 = vdwg.mxu0
    %s434 = scalar_lea.vmem %s1, 8
    %v435 = vld [vmem:[%s434] sm:$0x1f]
    %v436 = vmul.f32 %v432, %v435
    %v437 = vsel %vm224, %v436, 0.0
    %v438 = vrot.slane %v437, 4
    %v439 = vadd.f32 %v437, %v438
    %v440 = vrot.slane %v439, 2
    %v441 = vadd.f32 %v439, %v440
    %v442 = vrot.slane %v441, 1
    %v443 = vadd.f32 %v441, %v442
    %v444 = vsel %vm224, %v435, 0.0
    %v445 = vrot.slane %v444, 4
    %v446 = vadd.f32 %v444, %v445
    %v447 = vrot.slane %v446, 2
    %v448 = vadd.f32 %v446, %v447
    %v449 = vrot.slane %v448, 1
    %v450 = vadd.f32 %v448, %v449
    %v451 = vsub.f32 1.0, %v450
    %v452 = vmul.f32 %v451, %v432
    %v453 = vadd.f32 %v443, %v452
    %s454 = scalar_lea.vmem [#allocation2], 1
    %455 = vst.msk [vmem:[%s454] sm:$0x1] %vm242, %v453
    %s456 = scalar_lea.vmem %s2, 64
    %v457 = vld [vmem:[%s456] sm:$0xff]
    %v458 = vld [vmem:[%s456 + $0x8] sm:$0xff]
    %v459 = vld [vmem:[%s456 + $0x10] sm:$0xff]
    %v460 = vld [vmem:[%s456 + $0x18] sm:$0xff]
    %s461 = scalar_lea.vmem %s3, 64
    %v462 = vld [vmem:[%s461] sm:$0xff]
    %v463 = vld [vmem:[%s461 + $0x8] sm:$0xff]
    %v464 = vld [vmem:[%s461 + $0x10] sm:$0xff]
    %v465 = vld [vmem:[%s461 + $0x18] sm:$0xff]
    %467 = vset.pattern.permute.xlu0 0
    %468 = vperm.xlu0 %467, %v462
    %v469 = vpop.permute.xlu0 %468
    %472 = vset.pattern.permute.xlu0 0
    %473 = vperm.xlu0 %472, %v463
    %v474 = vpop.permute.xlu0 %473
    %477 = vset.pattern.permute.xlu0 0
    %478 = vperm.xlu0 %477, %v464
    %v479 = vpop.permute.xlu0 %478
    %482 = vset.pattern.permute.xlu0 0
    %483 = vperm.xlu0 %482, %v465
    %v484 = vpop.permute.xlu0 %483
    %v487 = vsel %vm64, %v457, 0
    %v490 = vsel %vm64, %v458, 0
    %v493 = vsel %vm64, %v459, 0
    %v496 = vsel %vm64, %v460, 0
    %498 = vmatpush.msra.mxu0 0.0
    %499 = vmatpush.msra.mxu0 0.0
    %500 = vmatpush.msra.mxu0 0.0
    %501 = vmatpush.msra.mxu0 0.0
    %502 = vmatpush.msra.mxu0 0.0
    %503 = vmatpush.msra.mxu0 0.0
    %504 = vmatpush.msra.mxu0 0.0
    %505 = vmatpush.msra.mxu0 0.0
    %506 = vmatpush.msra.mxu0 0.0
    %507 = vmatpush.msra.mxu0 0.0
    %508 = vmatpush.msra.mxu0 %v35
    %509 = vmatpush.msra.mxu0 %v34
    %510 = vmatpush.msra.mxu0 %v33
    %511 = vmatpush.msra.mxu0 %v32
    %512 = vmatpush.msra.mxu0 %v31
    %513 = vmatpush.msra.mxu0 %v30
    %514 = vmatmul.f32.gmra.mxu0 %v487
    %v515 = vpop.f32.mrf.mxu0
    %v516 = vadd.f32 %v469, %v515
    %517 = vmatmul.f32.gmra.mxu0 %v490
    %v518 = vpop.f32.mrf.mxu0
    %v519 = vadd.f32 %v474, %v518
    %520 = vmatmul.f32.gmra.mxu0 %v493
    %v521 = vpop.f32.mrf.mxu0
    %v522 = vadd.f32 %v479, %v521
    %523 = vmatmul.f32.gmra.mxu0 %v496
    %v524 = vpop.f32.mrf.mxu0
    %v525 = vadd.f32 %v484, %v524
    %526 = vdwg.mxu0
    %v527 = vmul.f32 %v516, 0.01
    %v528 = vmul.f32 %v519, 0.01
    %v529 = vmul.f32 %v522, 0.01
    %v530 = vmul.f32 %v525, 0.01
    %v531 = vmax.f32 %v516, %v527
    %v532 = vmax.f32 %v519, %v528
    %v533 = vmax.f32 %v522, %v529
    %v534 = vmax.f32 %v525, %v530
    %s535 = scalar_lea.vmem %s4, 64
    %v536 = vld [vmem:[%s535] sm:$0xff]
    %v537 = vld [vmem:[%s535 + $0x8] sm:$0xff]
    %v538 = vld [vmem:[%s535 + $0x10] sm:$0xff]
    %v539 = vld [vmem:[%s535 + $0x18] sm:$0xff]
    %s540 = scalar_lea.vmem %s5, 64
    %v541 = vld [vmem:[%s540] sm:$0xff]
    %v542 = vld [vmem:[%s540 + $0x8] sm:$0xff]
    %v543 = vld [vmem:[%s540 + $0x10] sm:$0xff]
    %v544 = vld [vmem:[%s540 + $0x18] sm:$0xff]
    %546 = vset.pattern.permute.xlu0 0
    %547 = vperm.xlu0 %546, %v541
    %v548 = vpop.permute.xlu0 %547
    %551 = vset.pattern.permute.xlu0 0
    %552 = vperm.xlu0 %551, %v542
    %v553 = vpop.permute.xlu0 %552
    %556 = vset.pattern.permute.xlu0 0
    %557 = vperm.xlu0 %556, %v543
    %v558 = vpop.permute.xlu0 %557
    %561 = vset.pattern.permute.xlu0 0
    %562 = vperm.xlu0 %561, %v544
    %v563 = vpop.permute.xlu0 %562
    %v566 = vsel %vm142, %v536, 0
    %v569 = vsel %vm142, %v537, 0
    %v572 = vsel %vm142, %v538, 0
    %v575 = vsel %vm142, %v539, 0
    %577 = vmatpush.msra.mxu0 0.0
    %578 = vmatpush.msra.mxu0 0.0
    %579 = vmatpush.msra.mxu0 0.0
    %580 = vmatpush.msra.mxu0 0.0
    %581 = vmatpush.msra.mxu0 0.0
    %582 = vmatpush.msra.mxu0 0.0
    %583 = vmatpush.msra.mxu0 0.0
    %584 = vmatpush.msra.mxu0 0.0
    %585 = vmatpush.msra.mxu0 0.0
    %586 = vmatpush.msra.mxu0 0.0
    %587 = vmatpush.msra.mxu0 0.0
    %588 = vmatpush.msra.mxu0 0.0
    %589 = vmatpush.msra.mxu0 %v534
    %590 = vmatpush.msra.mxu0 %v533
    %591 = vmatpush.msra.mxu0 %v532
    %592 = vmatpush.msra.mxu0 %v531
    %593 = vmatmul.f32.gmra.mxu0 %v566
    %v594 = vpop.f32.mrf.mxu0
    %v595 = vadd.f32 %v548, %v594
    %596 = vmatmul.f32.gmra.mxu0 %v569
    %v597 = vpop.f32.mrf.mxu0
    %v598 = vadd.f32 %v553, %v597
    %599 = vmatmul.f32.gmra.mxu0 %v572
    %v600 = vpop.f32.mrf.mxu0
    %v601 = vadd.f32 %v558, %v600
    %602 = vmatmul.f32.gmra.mxu0 %v575
    %v603 = vpop.f32.mrf.mxu0
    %v604 = vadd.f32 %v563, %v603
    %605 = vdwg.mxu0
    %v606 = vmul.f32 %v595, 0.01
    %v607 = vmul.f32 %v598, 0.01
    %v608 = vmul.f32 %v601, 0.01
    %v609 = vmul.f32 %v604, 0.01
    %v610 = vmax.f32 %v595, %v606
    %v611 = vmax.f32 %v598, %v607
    %v612 = vmax.f32 %v601, %v608
    %v613 = vmax.f32 %v604, %v609
    %s614 = scalar_lea.vmem %s6, 16
    %v615 = vld [vmem:[%s614] sm:$0x1f]
    %s616 = scalar_lea.vmem %s7, 16
    %v617 = vld [vmem:[%s616] sm:$0x1f]
    %619 = vset.pattern.permute.xlu0 0
    %620 = vperm.xlu0 %619, %v617
    %v621 = vpop.permute.xlu0 %620
    %v624 = vsel %vm142, %v615, 0
    %626 = vmatpush.msra.mxu0 0.0
    %627 = vmatpush.msra.mxu0 0.0
    %628 = vmatpush.msra.mxu0 0.0
    %629 = vmatpush.msra.mxu0 0.0
    %630 = vmatpush.msra.mxu0 0.0
    %631 = vmatpush.msra.mxu0 0.0
    %632 = vmatpush.msra.mxu0 0.0
    %633 = vmatpush.msra.mxu0 0.0
    %634 = vmatpush.msra.mxu0 0.0
    %635 = vmatpush.msra.mxu0 0.0
    %636 = vmatpush.msra.mxu0 0.0
    %637 = vmatpush.msra.mxu0 0.0
    %638 = vmatpush.msra.mxu0 %v613
    %639 = vmatpush.msra.mxu0 %v612
    %640 = vmatpush.msra.mxu0 %v611
    %641 = vmatpush.msra.mxu0 %v610
    %642 = vmatmul.f32.gmra.mxu0 %v624
    %v643 = vpop.f32.mrf.mxu0
    %v644 = vadd.f32 %v621, %v643
    %645 = vdwg.mxu0
    %s646 = scalar_lea.vmem %s1, 16
    %v647 = vld [vmem:[%s646] sm:$0x1f]
    %v648 = vmul.f32 %v644, %v647
    %v649 = vsel %vm224, %v648, 0.0
    %v650 = vrot.slane %v649, 4
    %v651 = vadd.f32 %v649, %v650
    %v652 = vrot.slane %v651, 2
    %v653 = vadd.f32 %v651, %v652
    %v654 = vrot.slane %v653, 1
    %v655 = vadd.f32 %v653, %v654
    %v656 = vsel %vm224, %v647, 0.0
    %v657 = vrot.slane %v656, 4
    %v658 = vadd.f32 %v656, %v657
    %v659 = vrot.slane %v658, 2
    %v660 = vadd.f32 %v658, %v659
    %v661 = vrot.slane %v660, 1
    %v662 = vadd.f32 %v660, %v661
    %v663 = vsub.f32 1.0, %v662
    %v664 = vmul.f32 %v663, %v644
    %v665 = vadd.f32 %v655, %v664
    %s666 = scalar_lea.vmem [#allocation2], 2
    %667 = vst.msk [vmem:[%s666] sm:$0x1] %vm242, %v665
    // Predicated region
    $region34: #{tpu_custom_call.1} parent=1 // pred_check
      _
    $region35: #{tpu_custom_call.1} parent=1 // pred_check_branch
      %669 = sbr.rel (0) target = $region37
    $region36: #{tpu_custom_call.1} parent=1 // pred_region
      %671 = vsyncadd [#allocation3], 0
      %s672 = sshll.u32 [#allocation2], 4
      %s673 = int_to_ptr.vmem [resolvable:$true] %s672
      %s674 = sshll.u32 %s8, 4
      %s675 = int_to_ptr.hbm [resolvable:$true] %s674
      %680 = dma.vmem_to_hbm [thread:$0]  %s673, 48, %s675, [#allocation3], 16, 16, 1
    $region37: #{tpu_custom_call.1} parent=1 // pred_fallthru
      _
    // Predicated region
    $region38: #{tpu_custom_call.1} parent=1 // pred_check
      _
    $region39: #{tpu_custom_call.1} parent=1 // pred_check_branch
      %682 = sbr.rel (0) target = $region41
    $region40: #{tpu_custom_call.1} parent=1 // pred_region
      %684 = dma.done [#allocation3], 48
    $region41: #{tpu_custom_call.1} parent=1 // pred_fallthru
      _
    %685 = vsyncpa [#allocation3], 1

</llo_original>
